<compile_context>
chip_gen: v7x
topology: tpu7x:2x2x1
jax: 0.10.0
libtpu: 0.0.40
codegen_flags: <defaults>
</compile_context>

<pallas_src>
import jax
import jax.numpy as jnp
from jax import lax
from jax.experimental import pallas as pl
from jax.experimental.pallas import tpu as pltpu

HIDDEN = 128


def _make_disc_kernel(compute_dtype):
    def _disc_kernel(x_ref, w1_ref, b1_ref, w2_ref, b2_ref, o_ref):
        # Layer 1 on the MXU.  Optional in-kernel cast to bf16 (zero extra HBM
        # traffic); accumulation is always f32.
        x = x_ref[...].astype(compute_dtype)
        w1 = w1_ref[...].astype(compute_dtype)
        h = jnp.dot(x, w1, preferred_element_type=jnp.float32)
        h = h + b1_ref[...].astype(jnp.float32)
        # LeakyReLU(0.1): single VALU max per vreg.
        h = jnp.maximum(h, 0.1 * h)
        # Layer 2 in transposed orientation so the result (1, TB) is
        # lane-dense: logits[0, n] = sum_k w2[0, k] * h[n, k]
        logits = lax.dot_general(
            w2_ref[...].astype(jnp.float32), h,
            dimension_numbers=(((1,), (1,)), ((), ())),
            preferred_element_type=jnp.float32,
        )
        logits = logits + b2_ref[0]  # scalar bias from SMEM
        # Exact sigmoid (exp on EUP; one div) -- free accuracy here.
        o_ref[...] = (1.0 / (1.0 + jnp.exp(-logits))).astype(o_ref.dtype)

    return _disc_kernel


def discriminator_forward(x, w1, b1, w2, b2, *, block_b=1024,
                          compute_dtype=jnp.float32):
    """x: (B, img_dim) float32 -> (B, 1) float32 sigmoid probabilities."""
    B, D = x.shape
    H = w1.shape[1]
    assert w1.shape == (D, H)
    assert b1.shape == (1, H)
    assert w2.shape == (H, 1)
    assert b2.shape == (1, 1)

    x_itemsize = jnp.dtype(x.dtype).itemsize

    if B <= block_b:
        # Single exact-size tile: no padded rows are streamed or multiplied.
        block_b = B
        num_tiles = 1
    else:
        # Multi-tile: lane/sublane-aligned tile, ragged last block handled by
        # Pallas (garbage rows stay isolated; sliced off in the wrapper).
        block_b = max(128, (block_b // 128) * 128)
        # Keep double-buffered x + weights comfortably inside the v5e 16 MiB
        # scoped-VMEM default (leave headroom for output/scratch).
        budget = 12 * 1024 * 1024
        while block_b > 128 and (2 * block_b * D * x_itemsize + D * H * 4) > budget:
            block_b //= 2
        num_tiles = pl.cdiv(B, block_b)
    B_pad = num_tiles * block_b

    w2_row = w2.reshape(1, H).astype(jnp.float32)
    b1_in = b1.astype(jnp.float32)
    b2_s = b2.reshape(1).astype(jnp.float32)  # scalar bias -> SMEM

    out_shape = jax.ShapeDtypeStruct((1, B_pad), jnp.float32)

    cost = pl.CostEstimate(
        flops=2 * B * D * H + 2 * B * H,
        transcendentals=B,
        bytes_accessed=(B * D * x_itemsize + D * H * 4
                        + (2 * H + 1) * 4 + B_pad * 4),
    )

    out = pl.pallas_call(
        _make_disc_kernel(compute_dtype),
        out_shape=out_shape,
        grid_spec=pltpu.PrefetchScalarGridSpec(
            num_scalar_prefetch=0,
            grid=(num_tiles,),
            in_specs=[
                # Batch-tiled activations: double-buffered HBM->VMEM pipeline.
                pl.BlockSpec((block_b, D), lambda i: (i, 0)),
                # Weights / biases: constant index_map -> VMEM-resident.
                pl.BlockSpec((D, H), lambda i: (0, 0)),
                pl.BlockSpec((1, H), lambda i: (0, 0)),
                pl.BlockSpec((1, H), lambda i: (0, 0)),
                # Scalar bias in SMEM (a (1,1) VMEM block would pad to (8,128)).
                pl.BlockSpec(memory_space=pltpu.MemorySpace.SMEM),
            ],
            # Lane-dense output slab: full-lane vst stores.
            out_specs=pl.BlockSpec((1, block_b), lambda i: (0, i)),
        ),
        compiler_params=pltpu.CompilerParams(
            dimension_semantics=("parallel",),
        ),
        cost_estimate=cost,
    )(x, w1, b1_in, w2_row, b2_s)

    # (1, B_pad) slab -> (B, 1) outside the kernel.
    return out.reshape(B_pad)[:B].reshape(B, 1)


def init_params(key, img_dim, hidden=HIDDEN):
    """Deterministic init mimicking nn.Linear's uniform(-1/sqrt(fan_in), +)."""
    k1, k2, k3, k4 = jax.random.split(key, 4)
    bound1 = 1.0 / jnp.sqrt(img_dim)
    bound2 = 1.0 / jnp.sqrt(hidden)
    # Stored as (in_features, out_features) == W.T of the PyTorch weight.
    w1 = jax.random.uniform(k1, (img_dim, hidden), jnp.float32, -bound1, bound1)
    b1 = jax.random.uniform(k2, (1, hidden), jnp.float32, -bound1, bound1)
    w2 = jax.random.uniform(k3, (hidden, 1), jnp.float32, -bound2, bound2)
    b2 = jax.random.uniform(k4, (1, 1), jnp.float32, -bound2, bound2)
    return w1, b1, w2, b2


def reference_forward(x, w1, b1, w2, b2):
    h = x @ w1 + b1
    h = jnp.where(h > 0, h, 0.1 * h)
    logits = h @ w2 + b2
    return jax.nn.sigmoid(logits)


if __name__ == "__main__":
    key = jax.random.PRNGKey(0)
    k1, k2, k3, k4 = jax.random.split(key, 4)

    # Case 1: small batch, f32 path, single exact-size tile (no padded rows).
    B1, D1 = 32, 784
    x1 = jax.random.normal(k1, (B1, D1), dtype=jnp.float32)
    p1 = init_params(k2, D1)
    out1 = jax.block_until_ready(discriminator_forward(x1, *p1))
    ref1 = reference_forward(x1, *p1)
    assert out1.shape == (B1, 1)
    assert jnp.max(jnp.abs(out1 - ref1)) < 1e-4

    # Case 2: MNIST-like dim, B not divisible by the tile (ragged last block),
    # multi-tile grid, in-kernel bf16 cast for the layer-1 matmul.
    B2, D2 = 300, 784
    x2 = jax.random.normal(k3, (B2, D2), dtype=jnp.float32)
    p2 = init_params(k4, D2)
    out2 = jax.block_until_ready(
        discriminator_forward(x2, *p2, block_b=128, compute_dtype=jnp.bfloat16))
    ref2 = reference_forward(x2, *p2)
    assert out2.shape == (B2, 1)
    # Tolerance covers bf16 matmul inputs (exact sigmoid now).
    assert jnp.max(jnp.abs(out2 - ref2)) < 2e-2

    print("KERNEL_OK")
</pallas_src>

<mosaic_0001>
module attributes {stable_mosaic.version = 11 : i64} {
  func.func @_disc_kernel(%arg0: i32, %arg1: memref<32x784xf32, #tpu.memory_space<vmem>>, %arg2: memref<784x128xf32, #tpu.memory_space<vmem>>, %arg3: memref<1x128xf32, #tpu.memory_space<vmem>>, %arg4: memref<1x128xf32, #tpu.memory_space<vmem>>, %arg5: memref<1xf32, #tpu.memory_space<smem>>, %arg6: memref<1x32xf32, #tpu.memory_space<vmem>>) attributes {dimension_semantics = [#tpu.dimension_semantics<parallel>], iteration_bounds = array<i64: 1>, scalar_prefetch = 0 : i64, scratch_operands = 0 : i64, tpu.core_type = #tpu.core_type<tc>, window_params = [{transform_indices = @transform_0, window_bounds = array<i64: 32, 784>}, {pipeline_mode = #tpu.pipeline_mode<synchronous>, transform_indices = @transform_1, window_bounds = array<i64: 784, 128>}, {pipeline_mode = #tpu.pipeline_mode<synchronous>, transform_indices = @transform_2, window_bounds = array<i64: 1, 128>}, {pipeline_mode = #tpu.pipeline_mode<synchronous>, transform_indices = @transform_3, window_bounds = array<i64: 1, 128>}, {transform_indices = @transform_4, window_bounds = array<i64: 1>}, {transform_indices = @transform_5, window_bounds = array<i64: 1, 32>}]} {
    %c0 = arith.constant 0 : index
    %c0_0 = arith.constant 0 : index
    %0 = vector.load %arg1[%c0, %c0_0] : memref<32x784xf32, #tpu.memory_space<vmem>>, vector<32x784xf32>
    %c0_1 = arith.constant 0 : index
    %c0_2 = arith.constant 0 : index
    %1 = vector.load %arg2[%c0_1, %c0_2] : memref<784x128xf32, #tpu.memory_space<vmem>>, vector<784x128xf32>
    %cst = arith.constant dense<0.000000e+00> : vector<32x128xf32>
    %2 = tpu.matmul %0, %1, %cst {dimension_numbers = #tpu.dot_dimension_numbers<[1], [0], [0], [1], [0, 0, 1, 1], [], []>} : vector<32x784xf32>, vector<784x128xf32>, vector<32x128xf32> -> vector<32x128xf32>
    %c0_3 = arith.constant 0 : index
    %c0_4 = arith.constant 0 : index
    %3 = vector.load %arg3[%c0_3, %c0_4] : memref<1x128xf32, #tpu.memory_space<vmem>>, vector<1x128xf32>
    %4 = vector.broadcast %3 : vector<1x128xf32> to vector<32x128xf32>
    %5 = arith.addf %2, %4 : vector<32x128xf32>
    %cst_5 = arith.constant 1.000000e-01 : f32
    %6 = vector.broadcast %cst_5 : f32 to vector<32x128xf32>
    %7 = arith.mulf %6, %5 : vector<32x128xf32>
    %8 = arith.maximumf %5, %7 : vector<32x128xf32>
    %c0_6 = arith.constant 0 : index
    %c0_7 = arith.constant 0 : index
    %9 = vector.load %arg4[%c0_6, %c0_7] : memref<1x128xf32, #tpu.memory_space<vmem>>, vector<1x128xf32>
    %cst_8 = arith.constant dense<0.000000e+00> : vector<1x32xf32>
    %10 = tpu.matmul %9, %8, %cst_8 {dimension_numbers = #tpu.dot_dimension_numbers<[1], [1], [0], [0], [0, 0, 1, 0], [], []>} : vector<1x128xf32>, vector<32x128xf32>, vector<1x32xf32> -> vector<1x32xf32>
    %c0_9 = arith.constant 0 : index
    %11 = memref.load %arg5[%c0_9] : memref<1xf32, #tpu.memory_space<smem>>
    %12 = vector.broadcast %11 : f32 to vector<1x32xf32>
    %13 = arith.addf %10, %12 : vector<1x32xf32>
    %cst_10 = arith.constant 0.000000e+00 : f32
    %14 = vector.broadcast %cst_10 : f32 to vector<1x32xf32>
    %15 = arith.subf %14, %13 : vector<1x32xf32>
    %16 = math.exp %15 : vector<1x32xf32>
    %cst_11 = arith.constant 1.000000e+00 : f32
    %17 = vector.broadcast %cst_11 : f32 to vector<1x32xf32>
    %18 = arith.addf %17, %16 : vector<1x32xf32>
    %cst_12 = arith.constant 1.000000e+00 : f32
    %19 = vector.broadcast %cst_12 : f32 to vector<1x32xf32>
    %20 = arith.divf %19, %18 : vector<1x32xf32>
    %c0_13 = arith.constant 0 : index
    %c0_14 = arith.constant 0 : index
    %21 = vector.load %arg6[%c0_13, %c0_14] : memref<1x32xf32, #tpu.memory_space<vmem>>, vector<1x32xf32>
    tpu.vector_store %arg6[%c0_13, %c0_14], %20 {strides = array<i32>} : memref<1x32xf32, #tpu.memory_space<vmem>>, vector<1x32xf32>,
    return
  }
  func.func @transform_0(%arg0: i32) -> (i32, i32) {
    %c0_i32 = arith.constant 0 : i32
    %c0_i32_0 = arith.constant 0 : i32
    return %arg0, %c0_i32 : i32, i32
  }
  func.func @transform_1(%arg0: i32) -> (i32, i32) {
    %c0_i32 = arith.constant 0 : i32
    %c0_i32_0 = arith.constant 0 : i32
    %c0_i32_1 = arith.constant 0 : i32
    return %c0_i32, %c0_i32_0 : i32, i32
  }
  func.func @transform_2(%arg0: i32) -> (i32, i32) {
    %c0_i32 = arith.constant 0 : i32
    %c0_i32_0 = arith.constant 0 : i32
    %c0_i32_1 = arith.constant 0 : i32
    return %c0_i32, %c0_i32_0 : i32, i32
  }
  func.func @transform_3(%arg0: i32) -> (i32, i32) {
    %c0_i32 = arith.constant 0 : i32
    %c0_i32_0 = arith.constant 0 : i32
    %c0_i32_1 = arith.constant 0 : i32
    return %c0_i32, %c0_i32_0 : i32, i32
  }
  func.func @transform_4(%arg0: i32) -> i32 {
    %c0_i32 = arith.constant 0 : i32
    %c0_i32_0 = arith.constant 0 : i32
    return %c0_i32 : i32
  }
  func.func @transform_5(%arg0: i32) -> (i32, i32) {
    %c0_i32 = arith.constant 0 : i32
    %c0_i32_0 = arith.constant 0 : i32
    return %c0_i32, %arg0 : i32, i32
  }
}

</mosaic_0001>

<llo_original>
// kernel: tpu_custom_call.1
$region0: #{tpu_custom_call.1}
  #allocation0 [shape = 'u32[]', space=smem, size = 0x4, offset = 0x4, fixed_abs, tag = 'smem constant byte address 0x4 - core index']
  #allocation1 [shape = 'u32[144,128]{1,0:T(1,128)}', space=vmem, size = 0x12000, scoped, tag = 'internal scratch']
  #allocation2 [shape = 'f32[1]{0:T(128)S(6)}', space=smem, size = 0x200, scoped, tag = 'scoped memory for tpu_custom_call.1']
  %s0 = inlined_call_operand.hbm [shape: f32[32,784], index: 0, kind: input, shape index: {}]
  %s1 = inlined_call_operand.hbm [shape: f32[784,128], index: 1, kind: input, shape index: {}]
  %s2 = inlined_call_operand.vmem [shape: f32[1,128], index: 2, kind: input, shape index: {}]
  %s3 = inlined_call_operand.vmem [shape: f32[1,128], index: 3, kind: input, shape index: {}]
  %s4 = inlined_call_operand.<no memory space> [shape: f32[1], index: 4, kind: input, shape index: {}]
  %s5 = inlined_call_operand.hbm [shape: f32[1,32], index: 5, kind: output, shape index: {}]
  %s6 = sld [smem:[#allocation0]]
  $region38: #{tpu_custom_call.1} parent=0
    _
  %s8 = ssub.s32 1, %s6
  %s9 = scalar_select 0, %s8, %s6
  %10 = sst [smem:[#allocation2]] %s4
  $region1: #{tpu_custom_call.1} parent=0
    #allocation3 [shape = 'u8[114688]{0}', space=vmem, size = 0x1c000, scoped, tag = 'input window, operand 0, single buffered']
    #allocation4 [shape = 's32[1]{0}', space=sflag, size = 0x4, scoped, tag = 'scoped memory for tpu_custom_call.1']
    #allocation5 [shape = 's32[1]{0}', space=sflag, size = 0x4, scoped, tag = 'scoped memory for tpu_custom_call.1']
    #allocation6 [shape = 'u8[401408]{0}', space=vmem, size = 0x62000, scoped, tag = 'input window, operand 1, single buffered']
    #allocation7 [shape = 's32[1]{0}', space=sflag, size = 0x4, scoped, tag = 'scoped memory for tpu_custom_call.1']
    #allocation8 [shape = 'u8[512]{0}', space=vmem, size = 0x400, scoped, tag = 'output window, operand 0, single buffered']
    %11 = vsyncpa [#allocation4], 0
    %12 = vsyncpa [#allocation7], 0
    %13 = vsyncpa [#allocation5], 0
    // Predicated region
    $region2: #{tpu_custom_call.1} parent=1 // pred_check
      _
    $region3: #{tpu_custom_call.1} parent=1 // pred_check_branch
      %15 = sbr.rel (0) target = $region5
    $region4: #{tpu_custom_call.1} parent=1 // pred_region
      %s17 = ssub.s32 3584, 3584
      %18 = vsyncadd [#allocation4], %s17
      %s19 = sshll.u32 [#allocation3], 4
      %s20 = int_to_ptr.vmem [resolvable:$true] %s19
      %25 = dma.hbm_to_vmem [thread:$0]  %s0, 3584, %s20, [#allocation4], 896, 896, 56
    $region5: #{tpu_custom_call.1} parent=1 // pred_fallthru
      _
    // Predicated region
    $region6: #{tpu_custom_call.1} parent=1 // pred_check
      _
    $region7: #{tpu_custom_call.1} parent=1 // pred_check_branch
      %27 = sbr.rel (0) target = $region9
    $region8: #{tpu_custom_call.1} parent=1 // pred_region
      %s29 = ssub.s32 12544, 12544
      %30 = vsyncadd [#allocation7], %s29
      %s31 = sshll.u32 [#allocation6], 4
      %s32 = int_to_ptr.vmem [resolvable:$true] %s31
      %37 = dma.hbm_to_vmem [thread:$0]  %s1, 12544, %s32, [#allocation7], 128, 128, 8
    $region9: #{tpu_custom_call.1} parent=1 // pred_fallthru
      _
    // Predicated region
    $region10: #{tpu_custom_call.1} parent=1 // pred_check
      _
    $region11: #{tpu_custom_call.1} parent=1 // pred_check_branch
      %39 = sbr.rel (0) target = $region13
    $region12: #{tpu_custom_call.1} parent=1 // pred_region
      _
    $region13: #{tpu_custom_call.1} parent=1 // pred_fallthru
      _
    // Predicated region
    $region14: #{tpu_custom_call.1} parent=1 // pred_check
      _
    $region15: #{tpu_custom_call.1} parent=1 // pred_check_branch
      %41 = sbr.rel (0) target = $region17
    $region16: #{tpu_custom_call.1} parent=1 // pred_region
      _
    $region17: #{tpu_custom_call.1} parent=1 // pred_fallthru
      _
    // Predicated region
    $region18: #{tpu_custom_call.1} parent=1 // pred_check
      _
    $region19: #{tpu_custom_call.1} parent=1 // pred_check_branch
      %43 = sbr.rel (0) target = $region21
    $region20: #{tpu_custom_call.1} parent=1 // pred_region
      _
    $region21: #{tpu_custom_call.1} parent=1 // pred_fallthru
      _
    // Predicated region
    $region22: #{tpu_custom_call.1} parent=1 // pred_check
      _
    $region23: #{tpu_custom_call.1} parent=1 // pred_check_branch
      %45 = sbr.rel (0) target = $region25
    $region24: #{tpu_custom_call.1} parent=1 // pred_region
      %46 = dma.done [#allocation4], 3584
    $region25: #{tpu_custom_call.1} parent=1 // pred_fallthru
      _
    // Predicated region
    $region26: #{tpu_custom_call.1} parent=1 // pred_check
      _
    $region27: #{tpu_custom_call.1} parent=1 // pred_check_branch
      %48 = sbr.rel (0) target = $region29
    $region28: #{tpu_custom_call.1} parent=1 // pred_region
      %49 = dma.done [#allocation7], 12544
    $region29: #{tpu_custom_call.1} parent=1 // pred_fallthru
      _
    %v50 = vld [vmem:[#allocation3] sm:$0xff]
    %v51 = vld [vmem:[#allocation3 + $0x8] sm:$0xff]
    %v52 = vld [vmem:[#allocation3 + $0x10] sm:$0xff]
    %v53 = vld [vmem:[#allocation3 + $0x18] sm:$0xff]
    %v54 = vld [vmem:[#allocation3 + $0x20] sm:$0xff]
    %v55 = vld [vmem:[#allocation3 + $0x28] sm:$0xff]
    %v56 = vld [vmem:[#allocation3 + $0x30] sm:$0xff]
    %v57 = vld [vmem:[#allocation3 + $0x38] sm:$0xff]
    %v58 = vld [vmem:[#allocation3 + $0x40] sm:$0xff]
    %v59 = vld [vmem:[#allocation3 + $0x48] sm:$0xff]
    %v60 = vld [vmem:[#allocation3 + $0x50] sm:$0xff]
    %v61 = vld [vmem:[#allocation3 + $0x58] sm:$0xff]
    %v62 = vld [vmem:[#allocation3 + $0x60] sm:$0xff]
    %v63 = vld [vmem:[#allocation3 + $0x68] sm:$0xff]
    %v64 = vld [vmem:[#allocation3 + $0x70] sm:$0xff]
    %v65 = vld [vmem:[#allocation3 + $0x78] sm:$0xff]
    %v66 = vld [vmem:[#allocation3 + $0x80] sm:$0xff]
    %v67 = vld [vmem:[#allocation3 + $0x88] sm:$0xff]
    %v68 = vld [vmem:[#allocation3 + $0x90] sm:$0xff]
    %v69 = vld [vmem:[#allocation3 + $0x98] sm:$0xff]
    %v70 = vld [vmem:[#allocation3 + $0xa0] sm:$0xff]
    %v71 = vld [vmem:[#allocation3 + $0xa8] sm:$0xff]
    %v72 = vld [vmem:[#allocation3 + $0xb0] sm:$0xff]
    %v73 = vld [vmem:[#allocation3 + $0xb8] sm:$0xff]
    %v74 = vld [vmem:[#allocation3 + $0xc0] sm:$0xff]
    %v75 = vld [vmem:[#allocation3 + $0xc8] sm:$0xff]
    %v76 = vld [vmem:[#allocation3 + $0xd0] sm:$0xff]
    %v77 = vld [vmem:[#allocation3 + $0xd8] sm:$0xff]
    %v78 = vld [vmem:[#allocation6] sm:$0xff]
    %v79 = vld [vmem:[#allocation6 + $0x8] sm:$0xff]
    %v80 = vld [vmem:[#allocation6 + $0x10] sm:$0xff]
    %v81 = vld [vmem:[#allocation6 + $0x18] sm:$0xff]
    %v82 = vld [vmem:[#allocation6 + $0x20] sm:$0xff]
    %v83 = vld [vmem:[#allocation6 + $0x28] sm:$0xff]
    %v84 = vld [vmem:[#allocation6 + $0x30] sm:$0xff]
    %v85 = vld [vmem:[#allocation6 + $0x38] sm:$0xff]
    %v86 = vld [vmem:[#allocation6 + $0x40] sm:$0xff]
    %v87 = vld [vmem:[#allocation6 + $0x48] sm:$0xff]
    %v88 = vld [vmem:[#allocation6 + $0x50] sm:$0xff]
    %v89 = vld [vmem:[#allocation6 + $0x58] sm:$0xff]
    %v90 = vld [vmem:[#allocation6 + $0x60] sm:$0xff]
    %v91 = vld [vmem:[#allocation6 + $0x68] sm:$0xff]
    %v92 = vld [vmem:[#allocation6 + $0x70] sm:$0xff]
    %v93 = vld [vmem:[#allocation6 + $0x78] sm:$0xff]
    %v94 = vld [vmem:[#allocation6 + $0x80] sm:$0xff]
    %v95 = vld [vmem:[#allocation6 + $0x88] sm:$0xff]
    %v96 = vld [vmem:[#allocation6 + $0x90] sm:$0xff]
    %v97 = vld [vmem:[#allocation6 + $0x98] sm:$0xff]
    %v98 = vld [vmem:[#allocation6 + $0xa0] sm:$0xff]
    %v99 = vld [vmem:[#allocation6 + $0xa8] sm:$0xff]
    %v100 = vld [vmem:[#allocation6 + $0xb0] sm:$0xff]
    %v101 = vld [vmem:[#allocation6 + $0xb8] sm:$0xff]
    %v102 = vld [vmem:[#allocation6 + $0xc0] sm:$0xff]
    %v103 = vld [vmem:[#allocation6 + $0xc8] sm:$0xff]
    %v104 = vld [vmem:[#allocation6 + $0xd0] sm:$0xff]
    %v105 = vld [vmem:[#allocation6 + $0xd8] sm:$0xff]
    %v106 = vld [vmem:[#allocation6 + $0xe0] sm:$0xff]
    %v107 = vld [vmem:[#allocation6 + $0xe8] sm:$0xff]
    %v108 = vld [vmem:[#allocation6 + $0xf0] sm:$0xff]
    %v109 = vld [vmem:[#allocation6 + $0xf8] sm:$0xff]
    %v110 = vld [vmem:[#allocation6 + $0x100] sm:$0xff]
    %v111 = vld [vmem:[#allocation6 + $0x108] sm:$0xff]
    %v112 = vld [vmem:[#allocation6 + $0x110] sm:$0xff]
    %v113 = vld [vmem:[#allocation6 + $0x118] sm:$0xff]
    %v114 = vld [vmem:[#allocation6 + $0x120] sm:$0xff]
    %v115 = vld [vmem:[#allocation6 + $0x128] sm:$0xff]
    %v116 = vld [vmem:[#allocation6 + $0x130] sm:$0xff]
    %v117 = vld [vmem:[#allocation6 + $0x138] sm:$0xff]
    %v118 = vld [vmem:[#allocation6 + $0x140] sm:$0xff]
    %v119 = vld [vmem:[#allocation6 + $0x148] sm:$0xff]
    %v120 = vld [vmem:[#allocation6 + $0x150] sm:$0xff]
    %v121 = vld [vmem:[#allocation6 + $0x158] sm:$0xff]
    %v122 = vld [vmem:[#allocation6 + $0x160] sm:$0xff]
    %v123 = vld [vmem:[#allocation6 + $0x168] sm:$0xff]
    %v124 = vld [vmem:[#allocation6 + $0x170] sm:$0xff]
    %v125 = vld [vmem:[#allocation6 + $0x178] sm:$0xff]
    %v126 = vld [vmem:[#allocation6 + $0x180] sm:$0xff]
    %v127 = vld [vmem:[#allocation6 + $0x188] sm:$0xff]
    %v128 = vld [vmem:[#allocation6 + $0x190] sm:$0xff]
    %v129 = vld [vmem:[#allocation6 + $0x198] sm:$0xff]
    %v130 = vld [vmem:[#allocation6 + $0x1a0] sm:$0xff]
    %v131 = vld [vmem:[#allocation6 + $0x1a8] sm:$0xff]
    %v132 = vld [vmem:[#allocation6 + $0x1b0] sm:$0xff]
    %v133 = vld [vmem:[#allocation6 + $0x1b8] sm:$0xff]
    %v134 = vld [vmem:[#allocation6 + $0x1c0] sm:$0xff]
    %v135 = vld [vmem:[#allocation6 + $0x1c8] sm:$0xff]
    %v136 = vld [vmem:[#allocation6 + $0x1d0] sm:$0xff]
    %v137 = vld [vmem:[#allocation6 + $0x1d8] sm:$0xff]
    %v138 = vld [vmem:[#allocation6 + $0x1e0] sm:$0xff]
    %v139 = vld [vmem:[#allocation6 + $0x1e8] sm:$0xff]
    %v140 = vld [vmem:[#allocation6 + $0x1f0] sm:$0xff]
    %v141 = vld [vmem:[#allocation6 + $0x1f8] sm:$0xff]
    %v142 = vld [vmem:[#allocation6 + $0x200] sm:$0xff]
    %v143 = vld [vmem:[#allocation6 + $0x208] sm:$0xff]
    %v144 = vld [vmem:[#allocation6 + $0x210] sm:$0xff]
    %v145 = vld [vmem:[#allocation6 + $0x218] sm:$0xff]
    %v146 = vld [vmem:[#allocation6 + $0x220] sm:$0xff]
    %v147 = vld [vmem:[#allocation6 + $0x228] sm:$0xff]
    %v148 = vld [vmem:[#allocation6 + $0x230] sm:$0xff]
    %v149 = vld [vmem:[#allocation6 + $0x238] sm:$0xff]
    %v150 = vld [vmem:[#allocation6 + $0x240] sm:$0xff]
    %v151 = vld [vmem:[#allocation6 + $0x248] sm:$0xff]
    %v152 = vld [vmem:[#allocation6 + $0x250] sm:$0xff]
    %v153 = vld [vmem:[#allocation6 + $0x258] sm:$0xff]
    %v154 = vld [vmem:[#allocation6 + $0x260] sm:$0xff]
    %v155 = vld [vmem:[#allocation6 + $0x268] sm:$0xff]
    %v156 = vld [vmem:[#allocation6 + $0x270] sm:$0xff]
    %v157 = vld [vmem:[#allocation6 + $0x278] sm:$0xff]
    %v158 = vld [vmem:[#allocation6 + $0x280] sm:$0xff]
    %v159 = vld [vmem:[#allocation6 + $0x288] sm:$0xff]
    %v160 = vld [vmem:[#allocation6 + $0x290] sm:$0xff]
    %v161 = vld [vmem:[#allocation6 + $0x298] sm:$0xff]
    %v162 = vld [vmem:[#allocation6 + $0x2a0] sm:$0xff]
    %v163 = vld [vmem:[#allocation6 + $0x2a8] sm:$0xff]
    %v164 = vld [vmem:[#allocation6 + $0x2b0] sm:$0xff]
    %v165 = vld [vmem:[#allocation6 + $0x2b8] sm:$0xff]
    %v166 = vld [vmem:[#allocation6 + $0x2c0] sm:$0xff]
    %v167 = vld [vmem:[#allocation6 + $0x2c8] sm:$0xff]
    %v168 = vld [vmem:[#allocation6 + $0x2d0] sm:$0xff]
    %v169 = vld [vmem:[#allocation6 + $0x2d8] sm:$0xff]
    %v170 = vld [vmem:[#allocation6 + $0x2e0] sm:$0xff]
    %v171 = vld [vmem:[#allocation6 + $0x2e8] sm:$0xff]
    %v172 = vld [vmem:[#allocation6 + $0x2f0] sm:$0xff]
    %v173 = vld [vmem:[#allocation6 + $0x2f8] sm:$0xff]
    %v174 = vld [vmem:[#allocation6 + $0x300] sm:$0xff]
    %v175 = vld [vmem:[#allocation6 + $0x308] sm:$0xff]
    %v176 = vld [vmem:[%s2] sm:$0x1]
    %v178 = vlaneseq
    %v179 = vshrl.u32 %v178, 7
    %v180 = vsub.s32 0, %v179
    %v181 = vrot.slane %v176, %v180
    %vm183 = vcmask 130048
    %v185 = vsel %vm183, %v56, 0
    %v188 = vsel %vm183, %v63, 0
    %v191 = vsel %vm183, %v70, 0
    %v194 = vsel %vm183, %v77, 0
    %196 = vmatprep.subr.mxu0 0.0
    %197 = vmatpush1.msra.mxu0 %v78
    %198 = vmatprep.subr.mxu0 0.0
    %199 = vmatpush1.msra.mxu0 %v79
    %200 = vmatprep.subr.mxu0 0.0
    %201 = vmatpush1.msra.mxu0 %v80
    %202 = vmatprep.subr.mxu0 0.0
    %203 = vmatpush1.msra.mxu0 %v81
    %204 = vmatprep.subr.mxu0 0.0
    %205 = vmatpush1.msra.mxu0 %v82
    %206 = vmatprep.subr.mxu0 0.0
    %207 = vmatpush1.msra.mxu0 %v83
    %208 = vmatprep.subr.mxu0 0.0
    %209 = vmatpush1.msra.mxu0 %v84
    %210 = vmatprep.subr.mxu0 0.0
    %211 = vmatpush1.msra.mxu0 %v85
    %212 = vmatprep.subr.mxu0 0.0
    %213 = vmatpush1.msra.mxu0 %v86
    %214 = vmatprep.subr.mxu0 0.0
    %215 = vmatpush1.msra.mxu0 %v87
    %216 = vmatprep.subr.mxu0 0.0
    %217 = vmatpush1.msra.mxu0 %v88
    %218 = vmatprep.subr.mxu0 0.0
    %219 = vmatpush1.msra.mxu0 %v89
    %220 = vmatprep.subr.mxu0 0.0
    %221 = vmatpush1.msra.mxu0 %v90
    %222 = vmatprep.subr.mxu0 0.0
    %223 = vmatpush1.msra.mxu0 %v91
    %224 = vmatprep.subr.mxu0 0.0
    %225 = vmatpush1.msra.mxu0 %v92
    %226 = vmatprep.subr.mxu0 0.0
    %227 = vmatpush1.msra.mxu0 %v93
    %228 = vmatprep.subr.mxu0 0.0
    %229 = vmatpush1.msra.mxu0 %v94
    %230 = vmatprep.subr.mxu0 0.0
    %231 = vmatpush1.msra.mxu0 %v95
    %232 = vmatprep.subr.mxu0 0.0
    %233 = vmatpush1.msra.mxu0 %v96
    %234 = vmatprep.subr.mxu0 0.0
    %235 = vmatpush1.msra.mxu0 %v97
    %236 = vmatprep.subr.mxu0 0.0
    %237 = vmatpush1.msra.mxu0 %v98
    %238 = vmatprep.subr.mxu0 0.0
    %239 = vmatpush1.msra.mxu0 %v99
    %240 = vmatprep.subr.mxu0 0.0
    %241 = vmatpush1.msra.mxu0 %v100
    %242 = vmatprep.subr.mxu0 0.0
    %243 = vmatpush1.msra.mxu0 %v101
    %244 = vmatprep.subr.mxu0 0.0
    %245 = vmatpush1.msra.mxu0 %v102
    %246 = vmatprep.subr.mxu0 0.0
    %247 = vmatpush1.msra.mxu0 %v103
    %248 = vmatprep.subr.mxu0 0.0
    %249 = vmatpush1.msra.mxu0 %v104
    %250 = vmatprep.subr.mxu0 0.0
    %251 = vmatpush1.msra.mxu0 %v105
    %252 = vmatprep.subr.mxu0 0.0
    %253 = vmatpush1.msra.mxu0 %v106
    %254 = vmatprep.subr.mxu0 0.0
    %255 = vmatpush1.msra.mxu0 %v107
    %256 = vmatprep.subr.mxu0 0.0
    %257 = vmatpush1.msra.mxu0 %v108
    %258 = vmatprep.subr.mxu0 0.0
    %259 = vmatpush1.msra.mxu0 %v109
    %260 = vmatprep.mubr.f32.mxu0 %v51
    %261 = vmatmul.mubr.f32.gmra.mrb[0].mxu0 %v50
    %v262 = vpop.f32.mrb[0].mxu0
    %v263 = vadd.f32 %v181, %v262
    %v264 = vpop.f32.mrb[0].mxu0
    %265 = vmatprep.mubr.f32.mxu0 %v58
    %266 = vmatmul.mubr.f32.gmra.mrb[0].mxu0 %v57
    %v267 = vpop.f32.mrb[0].mxu0
    %v268 = vadd.f32 %v181, %v267
    %v269 = vpop.f32.mrb[0].mxu0
    %270 = vmatprep.mubr.f32.mxu0 %v65
    %271 = vmatmul.mubr.f32.gmra.mrb[0].mxu0 %v64
    %v272 = vpop.f32.mrb[0].mxu0
    %v273 = vadd.f32 %v181, %v272
    %v274 = vpop.f32.mrb[0].mxu0
    %275 = vmatprep.mubr.f32.mxu0 %v72
    %276 = vmatmul.mubr.f32.gmra.mrb[0].mxu0 %v71
    %v277 = vpop.f32.mrb[0].mxu0
    %v278 = vadd.f32 %v181, %v277
    %v279 = vpop.f32.mrb[0].mxu0
    %280 = vdwg.mxu0
    %281 = vmatprep.subr.mxu0 0.0
    %282 = vmatpush1.msra.mxu0 %v110
    %283 = vmatprep.subr.mxu0 0.0
    %284 = vmatpush1.msra.mxu0 %v111
    %285 = vmatprep.subr.mxu0 0.0
    %286 = vmatpush1.msra.mxu0 %v112
    %287 = vmatprep.subr.mxu0 0.0
    %288 = vmatpush1.msra.mxu0 %v113
    %289 = vmatprep.subr.mxu0 0.0
    %290 = vmatpush1.msra.mxu0 %v114
    %291 = vmatprep.subr.mxu0 0.0
    %292 = vmatpush1.msra.mxu0 %v115
    %293 = vmatprep.subr.mxu0 0.0
    %294 = vmatpush1.msra.mxu0 %v116
    %295 = vmatprep.subr.mxu0 0.0
    %296 = vmatpush1.msra.mxu0 %v117
    %297 = vmatprep.subr.mxu0 0.0
    %298 = vmatpush1.msra.mxu0 %v118
    %299 = vmatprep.subr.mxu0 0.0
    %300 = vmatpush1.msra.mxu0 %v119
    %301 = vmatprep.subr.mxu0 0.0
    %302 = vmatpush1.msra.mxu0 %v120
    %303 = vmatprep.subr.mxu0 0.0
    %304 = vmatpush1.msra.mxu0 %v121
    %305 = vmatprep.subr.mxu0 0.0
    %306 = vmatpush1.msra.mxu0 %v122
    %307 = vmatprep.subr.mxu0 0.0
    %308 = vmatpush1.msra.mxu0 %v123
    %309 = vmatprep.subr.mxu0 0.0
    %310 = vmatpush1.msra.mxu0 %v124
    %311 = vmatprep.subr.mxu0 0.0
    %312 = vmatpush1.msra.mxu0 %v125
    %313 = vmatprep.subr.mxu0 0.0
    %314 = vmatpush1.msra.mxu0 %v126
    %315 = vmatprep.subr.mxu0 0.0
    %316 = vmatpush1.msra.mxu0 %v127
    %317 = vmatprep.subr.mxu0 0.0
    %318 = vmatpush1.msra.mxu0 %v128
    %319 = vmatprep.subr.mxu0 0.0
    %320 = vmatpush1.msra.mxu0 %v129
    %321 = vmatprep.subr.mxu0 0.0
    %322 = vmatpush1.msra.mxu0 %v130
    %323 = vmatprep.subr.mxu0 0.0
    %324 = vmatpush1.msra.mxu0 %v131
    %325 = vmatprep.subr.mxu0 0.0
    %326 = vmatpush1.msra.mxu0 %v132
    %327 = vmatprep.subr.mxu0 0.0
    %328 = vmatpush1.msra.mxu0 %v133
    %329 = vmatprep.subr.mxu0 0.0
    %330 = vmatpush1.msra.mxu0 %v134
    %331 = vmatprep.subr.mxu0 0.0
    %332 = vmatpush1.msra.mxu0 %v135
    %333 = vmatprep.subr.mxu0 0.0
    %334 = vmatpush1.msra.mxu0 %v136
    %335 = vmatprep.subr.mxu0 0.0
    %336 = vmatpush1.msra.mxu0 %v137
    %337 = vmatprep.subr.mxu0 0.0
    %338 = vmatpush1.msra.mxu0 %v138
    %339 = vmatprep.subr.mxu0 0.0
    %340 = vmatpush1.msra.mxu0 %v139
    %341 = vmatprep.subr.mxu0 0.0
    %342 = vmatpush1.msra.mxu0 %v140
    %343 = vmatprep.subr.mxu0 0.0
    %344 = vmatpush1.msra.mxu0 %v141
    %345 = vmatprep.mubr.f32.mxu0 %v53
    %346 = vmatmul.mubr.f32.gmra.mrb[0].mxu0 %v52
    %v347 = vpop.f32.mrb[0].mxu0
    %v348 = vadd.f32 %v263, %v347
    %v349 = vpop.f32.mrb[0].mxu0
    %350 = vmatprep.mubr.f32.mxu0 %v60
    %351 = vmatmul.mubr.f32.gmra.mrb[0].mxu0 %v59
    %v352 = vpop.f32.mrb[0].mxu0
    %v353 = vadd.f32 %v268, %v352
    %v354 = vpop.f32.mrb[0].mxu0
    %355 = vmatprep.mubr.f32.mxu0 %v67
    %356 = vmatmul.mubr.f32.gmra.mrb[0].mxu0 %v66
    %v357 = vpop.f32.mrb[0].mxu0
    %v358 = vadd.f32 %v273, %v357
    %v359 = vpop.f32.mrb[0].mxu0
    %360 = vmatprep.mubr.f32.mxu0 %v74
    %361 = vmatmul.mubr.f32.gmra.mrb[0].mxu0 %v73
    %v362 = vpop.f32.mrb[0].mxu0
    %v363 = vadd.f32 %v278, %v362
    %v364 = vpop.f32.mrb[0].mxu0
    %365 = vdwg.mxu0
    %366 = vmatprep.subr.mxu0 0.0
    %367 = vmatpush1.msra.mxu0 %v142
    %368 = vmatprep.subr.mxu0 0.0
    %369 = vmatpush1.msra.mxu0 %v143
    %370 = vmatprep.subr.mxu0 0.0
    %371 = vmatpush1.msra.mxu0 %v144
    %372 = vmatprep.subr.mxu0 0.0
    %373 = vmatpush1.msra.mxu0 %v145
    %374 = vmatprep.subr.mxu0 0.0
    %375 = vmatpush1.msra.mxu0 %v146
    %376 = vmatprep.subr.mxu0 0.0
    %377 = vmatpush1.msra.mxu0 %v147
    %378 = vmatprep.subr.mxu0 0.0
    %379 = vmatpush1.msra.mxu0 %v148
    %380 = vmatprep.subr.mxu0 0.0
    %381 = vmatpush1.msra.mxu0 %v149
    %382 = vmatprep.subr.mxu0 0.0
    %383 = vmatpush1.msra.mxu0 %v150
    %384 = vmatprep.subr.mxu0 0.0
    %385 = vmatpush1.msra.mxu0 %v151
    %386 = vmatprep.subr.mxu0 0.0
    %387 = vmatpush1.msra.mxu0 %v152
    %388 = vmatprep.subr.mxu0 0.0
    %389 = vmatpush1.msra.mxu0 %v153
    %390 = vmatprep.subr.mxu0 0.0
    %391 = vmatpush1.msra.mxu0 %v154
    %392 = vmatprep.subr.mxu0 0.0
    %393 = vmatpush1.msra.mxu0 %v155
    %394 = vmatprep.subr.mxu0 0.0
    %395 = vmatpush1.msra.mxu0 %v156
    %396 = vmatprep.subr.mxu0 0.0
    %397 = vmatpush1.msra.mxu0 %v157
    %398 = vmatprep.subr.mxu0 0.0
    %399 = vmatpush1.msra.mxu0 %v158
    %400 = vmatprep.subr.mxu0 0.0
    %401 = vmatpush1.msra.mxu0 %v159
    %402 = vmatprep.subr.mxu0 0.0
    %403 = vmatpush1.msra.mxu0 %v160
    %404 = vmatprep.subr.mxu0 0.0
    %405 = vmatpush1.msra.mxu0 %v161
    %406 = vmatprep.subr.mxu0 0.0
    %407 = vmatpush1.msra.mxu0 %v162
    %408 = vmatprep.subr.mxu0 0.0
    %409 = vmatpush1.msra.mxu0 %v163
    %410 = vmatprep.subr.mxu0 0.0
    %411 = vmatpush1.msra.mxu0 %v164
    %412 = vmatprep.subr.mxu0 0.0
    %413 = vmatpush1.msra.mxu0 %v165
    %414 = vmatprep.subr.mxu0 0.0
    %415 = vmatpush1.msra.mxu0 %v166
    %416 = vmatprep.subr.mxu0 0.0
    %417 = vmatpush1.msra.mxu0 %v167
    %418 = vmatprep.subr.mxu0 0.0
    %419 = vmatpush1.msra.mxu0 %v168
    %420 = vmatprep.subr.mxu0 0.0
    %421 = vmatpush1.msra.mxu0 %v169
    %422 = vmatprep.subr.mxu0 0.0
    %423 = vmatpush1.msra.mxu0 %v170
    %424 = vmatprep.subr.mxu0 0.0
    %425 = vmatpush1.msra.mxu0 %v171
    %426 = vmatprep.subr.mxu0 0.0
    %427 = vmatpush1.msra.mxu0 %v172
    %428 = vmatprep.subr.mxu0 0.0
    %429 = vmatpush1.msra.mxu0 %v173
    %430 = vmatprep.mubr.f32.mxu0 %v55
    %431 = vmatmul.mubr.f32.gmra.mrb[0].mxu0 %v54
    %v432 = vpop.f32.mrb[0].mxu0
    %v433 = vadd.f32 %v348, %v432
    %v434 = vpop.f32.mrb[0].mxu0
    %435 = vmatprep.mubr.f32.mxu0 %v62
    %436 = vmatmul.mubr.f32.gmra.mrb[0].mxu0 %v61
    %v437 = vpop.f32.mrb[0].mxu0
    %v438 = vadd.f32 %v353, %v437
    %v439 = vpop.f32.mrb[0].mxu0
    %440 = vmatprep.mubr.f32.mxu0 %v69
    %441 = vmatmul.mubr.f32.gmra.mrb[0].mxu0 %v68
    %v442 = vpop.f32.mrb[0].mxu0
    %v443 = vadd.f32 %v358, %v442
    %v444 = vpop.f32.mrb[0].mxu0
    %445 = vmatprep.mubr.f32.mxu0 %v76
    %446 = vmatmul.mubr.f32.gmra.mrb[0].mxu0 %v75
    %v447 = vpop.f32.mrb[0].mxu0
    %v448 = vadd.f32 %v363, %v447
    %v449 = vpop.f32.mrb[0].mxu0
    %450 = vdwg.mxu0
    %451 = vmatprep.subr.mxu0 0.0
    %452 = vmatpush1.msra.mxu0 %v174
    %453 = vmatprep.subr.mxu0 0.0
    %454 = vmatpush1.msra.mxu0 %v175
    %455 = vmatprep.subr.mxu0 0.0
    %456 = vmatpush1.msra.mxu0 0.0
    %457 = vmatprep.subr.mxu0 0.0
    %458 = vmatpush1.msra.mxu0 0.0
    %459 = vmatprep.subr.mxu0 0.0
    %460 = vmatpush1.msra.mxu0 0.0
    %461 = vmatprep.subr.mxu0 0.0
    %462 = vmatpush1.msra.mxu0 0.0
    %463 = vmatprep.subr.mxu0 0.0
    %464 = vmatpush1.msra.mxu0 0.0
    %465 = vmatprep.subr.mxu0 0.0
    %466 = vmatpush1.msra.mxu0 0.0
    %467 = vmatprep.subr.mxu0 0.0
    %468 = vmatpush1.msra.mxu0 0.0
    %469 = vmatprep.subr.mxu0 0.0
    %470 = vmatpush1.msra.mxu0 0.0
    %471 = vmatprep.subr.mxu0 0.0
    %472 = vmatpush1.msra.mxu0 0.0
    %473 = vmatprep.subr.mxu0 0.0
    %474 = vmatpush1.msra.mxu0 0.0
    %475 = vmatprep.subr.mxu0 0.0
    %476 = vmatpush1.msra.mxu0 0.0
    %477 = vmatprep.subr.mxu0 0.0
    %478 = vmatpush1.msra.mxu0 0.0
    %479 = vmatprep.subr.mxu0 0.0
    %480 = vmatpush1.msra.mxu0 0.0
    %481 = vmatprep.subr.mxu0 0.0
    %482 = vmatpush1.msra.mxu0 0.0
    %483 = vmatprep.subr.mxu0 0.0
    %484 = vmatpush1.msra.mxu0 0.0
    %485 = vmatprep.subr.mxu0 0.0
    %486 = vmatpush1.msra.mxu0 0.0
    %487 = vmatprep.subr.mxu0 0.0
    %488 = vmatpush1.msra.mxu0 0.0
    %489 = vmatprep.subr.mxu0 0.0
    %490 = vmatpush1.msra.mxu0 0.0
    %491 = vmatprep.subr.mxu0 0.0
    %492 = vmatpush1.msra.mxu0 0.0
    %493 = vmatprep.subr.mxu0 0.0
    %494 = vmatpush1.msra.mxu0 0.0
    %495 = vmatprep.subr.mxu0 0.0
    %496 = vmatpush1.msra.mxu0 0.0
    %497 = vmatprep.subr.mxu0 0.0
    %498 = vmatpush1.msra.mxu0 0.0
    %499 = vmatprep.subr.mxu0 0.0
    %500 = vmatpush1.msra.mxu0 0.0
    %501 = vmatprep.subr.mxu0 0.0
    %502 = vmatpush1.msra.mxu0 0.0
    %503 = vmatprep.subr.mxu0 0.0
    %504 = vmatpush1.msra.mxu0 0.0
    %505 = vmatprep.subr.mxu0 0.0
    %506 = vmatpush1.msra.mxu0 0.0
    %507 = vmatprep.subr.mxu0 0.0
    %508 = vmatpush1.msra.mxu0 0.0
    %509 = vmatprep.subr.mxu0 0.0
    %510 = vmatpush1.msra.mxu0 0.0
    %511 = vmatprep.subr.mxu0 0.0
    %512 = vmatpush1.msra.mxu0 0.0
    %513 = vmatprep.subr.mxu0 0.0
    %514 = vmatpush1.msra.mxu0 0.0
    %515 = vmatprep.mubr.f32.mxu0 0.0
    %516 = vmatmul.mubr.f32.gmra.mrb[0].mxu0 %v185
    %v517 = vpop.f32.mrb[0].mxu0
    %v518 = vadd.f32 %v433, %v517
    %v519 = vpop.f32.mrb[0].mxu0
    %520 = vmatprep.mubr.f32.mxu0 0.0
    %521 = vmatmul.mubr.f32.gmra.mrb[0].mxu0 %v188
    %v522 = vpop.f32.mrb[0].mxu0
    %v523 = vadd.f32 %v438, %v522
    %v524 = vpop.f32.mrb[0].mxu0
    %525 = vmatprep.mubr.f32.mxu0 0.0
    %526 = vmatmul.mubr.f32.gmra.mrb[0].mxu0 %v191
    %v527 = vpop.f32.mrb[0].mxu0
    %v528 = vadd.f32 %v443, %v527
    %v529 = vpop.f32.mrb[0].mxu0
    %530 = vmatprep.mubr.f32.mxu0 0.0
    %531 = vmatmul.mubr.f32.gmra.mrb[0].mxu0 %v194
    %v532 = vpop.f32.mrb[0].mxu0
    %v533 = vadd.f32 %v448, %v532
    %v534 = vpop.f32.mrb[0].mxu0
    %535 = vdwg.mxu0
    %v536 = vmul.f32 %v518, 0.1
    %v537 = vmul.f32 %v523, 0.1
    %v538 = vmul.f32 %v528, 0.1
    %v539 = vmul.f32 %v533, 0.1
    %v540 = vmax.f32 %v518, %v536
    %v541 = vmax.f32 %v523, %v537
    %v542 = vmax.f32 %v528, %v538
    %v543 = vmax.f32 %v533, %v539
    %v544 = vld [vmem:[%s3] sm:$0x1]
    %s545 = sld [smem:[#allocation2]]
    %v546 = vstv %s545
    %547 = vmatprep.subr.mxu0 0.0
    %548 = vmatpush1.xpose.msra.mxu0 %v540
    %549 = vmatprep.subr.mxu0 0.0
    %550 = vmatpush1.xpose.msra.mxu0 %v541
    %551 = vmatprep.subr.mxu0 0.0
    %552 = vmatpush1.xpose.msra.mxu0 %v542
    %553 = vmatprep.subr.mxu0 0.0
    %554 = vmatpush1.xpose.msra.mxu0 %v543
    %555 = vmatprep.subr.mxu0 0.0
    %556 = vmatpush1.xpose.msra.mxu0 0.0
    %557 = vmatprep.subr.mxu0 0.0
    %558 = vmatpush1.xpose.msra.mxu0 0.0
    %559 = vmatprep.subr.mxu0 0.0
    %560 = vmatpush1.xpose.msra.mxu0 0.0
    %561 = vmatprep.subr.mxu0 0.0
    %562 = vmatpush1.xpose.msra.mxu0 0.0
    %563 = vmatprep.subr.mxu0 0.0
    %564 = vmatpush1.xpose.msra.mxu0 0.0
    %565 = vmatprep.subr.mxu0 0.0
    %566 = vmatpush1.xpose.msra.mxu0 0.0
    %567 = vmatprep.subr.mxu0 0.0
    %568 = vmatpush1.xpose.msra.mxu0 0.0
    %569 = vmatprep.subr.mxu0 0.0
    %570 = vmatpush1.xpose.msra.mxu0 0.0
    %571 = vmatprep.subr.mxu0 0.0
    %572 = vmatpush1.xpose.msra.mxu0 0.0
    %573 = vmatprep.subr.mxu0 0.0
    %574 = vmatpush1.xpose.msra.mxu0 0.0
    %575 = vmatprep.subr.mxu0 0.0
    %576 = vmatpush1.xpose.msra.mxu0 0.0
    %577 = vmatprep.subr.mxu0 0.0
    %578 = vmatpush1.xpose.msra.mxu0 0.0
    %579 = vmatprep.subr.mxu0 0.0
    %580 = vmatpush1.xpose.msra.mxu0 0.0
    %581 = vmatprep.subr.mxu0 0.0
    %582 = vmatpush1.xpose.msra.mxu0 0.0
    %583 = vmatprep.subr.mxu0 0.0
    %584 = vmatpush1.xpose.msra.mxu0 0.0
    %585 = vmatprep.subr.mxu0 0.0
    %586 = vmatpush1.xpose.msra.mxu0 0.0
    %587 = vmatprep.subr.mxu0 0.0
    %588 = vmatpush1.xpose.msra.mxu0 0.0
    %589 = vmatprep.subr.mxu0 0.0
    %590 = vmatpush1.xpose.msra.mxu0 0.0
    %591 = vmatprep.subr.mxu0 0.0
    %592 = vmatpush1.xpose.msra.mxu0 0.0
    %593 = vmatprep.subr.mxu0 0.0
    %594 = vmatpush1.xpose.msra.mxu0 0.0
    %595 = vmatprep.subr.mxu0 0.0
    %596 = vmatpush1.xpose.msra.mxu0 0.0
    %597 = vmatprep.subr.mxu0 0.0
    %598 = vmatpush1.xpose.msra.mxu0 0.0
    %599 = vmatprep.subr.mxu0 0.0
    %600 = vmatpush1.xpose.msra.mxu0 0.0
    %601 = vmatprep.subr.mxu0 0.0
    %602 = vmatpush1.xpose.msra.mxu0 0.0
    %603 = vmatprep.subr.mxu0 0.0
    %604 = vmatpush1.xpose.msra.mxu0 0.0
    %605 = vmatprep.subr.mxu0 0.0
    %606 = vmatpush1.xpose.msra.mxu0 0.0
    %607 = vmatprep.subr.mxu0 0.0
    %608 = vmatpush1.xpose.msra.mxu0 0.0
    %609 = vmatprep.subr.mxu0 0.0
    %610 = vmatpush1.xpose.msra.mxu0 0.0
    %611 = vmatprep.mubr.f32.mxu0 0.0
    %612 = vmatmul.mubr.f32.gmra.mrb[0].mxu0 %v544
    %v613 = vpop.f32.mrb[0].mxu0
    %v614 = vadd.f32 %v546, %v613
    %v615 = vpop.f32.mrb[0].mxu0
    %616 = vdwg.mxu0
    %v617 = vsub.f32 0.0, %v614
    %v618 = vmul.f32 %v617, 1.442695
    %v619 = vpow.pop %v618
    %v620 = vadd.f32 %v619, 1.0
    %v621 = vrcp.pop %v620
    %v622 = vmul.f32 1.0, %v621
    %vm623 = vcmask 253952
    %624 = vst.msk [vmem:[#allocation8] sm:$0x1] %vm623, %v622
    // Predicated region
    $region30: #{tpu_custom_call.1} parent=1 // pred_check
      _
    $region31: #{tpu_custom_call.1} parent=1 // pred_check_branch
      %626 = sbr.rel (0) target = $region33
    $region32: #{tpu_custom_call.1} parent=1 // pred_region
      %s628 = ssub.s32 16, 16
      %629 = vsyncadd [#allocation5], %s628
      %s631 = sshll.u32 [#allocation8], 4
      %s632 = int_to_ptr.vmem [resolvable:$true] %s631
      %634 = dma.vmem_to_hbm [thread:$0]  %s632, 16, %s5, [#allocation5]
    $region33: #{tpu_custom_call.1} parent=1 // pred_fallthru
      _
    // Predicated region
    $region34: #{tpu_custom_call.1} parent=1 // pred_check
      _
    $region35: #{tpu_custom_call.1} parent=1 // pred_check_branch
      %636 = sbr.rel (0) target = $region37
    $region36: #{tpu_custom_call.1} parent=1 // pred_region
      %637 = dma.done [#allocation5], 16
    $region37: #{tpu_custom_call.1} parent=1 // pred_fallthru
      _
    %638 = vsyncpa [#allocation4], 1
    %639 = vsyncpa [#allocation7], 1
    %640 = vsyncpa [#allocation5], 1

</llo_original>
